<compile_context>
chip_gen: v5e
topology: v5e:2x2
jax: 0.10.0
libtpu: 0.0.40
codegen_flags: <defaults>
</compile_context>

<pallas_src>
import functools
import math

import jax
import jax.numpy as jnp
from jax.experimental import pallas as pl
from jax.experimental.pallas import tpu as pltpu

TOK_BLOCK = 1024   # max tokens per grid step (amortizes ~0.35us/step overhead)
SUB_BLOCK = 256    # inner matmul chunk (keeps one-hot vreg pressure bounded)


def _round_up(x, m):
    return (x + m - 1) // m * m


def _cdiv(a, b):
    return -(-a // b)


def _pick_tok_block(n_tokens, max_block=TOK_BLOCK, sub=SUB_BLOCK):
    """Largest tile that still yields >= 2 grid steps (v7x 2-TC 'parallel' split)."""
    if n_tokens <= 8:
        return 8
    n_steps = max(2, _cdiv(n_tokens, max_block))
    tb = _cdiv(n_tokens, n_steps)
    tb = _round_up(tb, sub) if tb > sub else _round_up(tb, 8)
    return min(tb, max_block)


def _vmem_capacity_bytes():
    try:
        return int(pltpu.get_tpu_info().vmem_capacity_bytes)
    except Exception:
        return 64 << 20  # conservative: v7x per-TensorCore VMEM


def _token_embedding_kernel(ids_ref, table_ref, out_ref, *, scale, vocab_size,
                            sub_block, fold_scale, precision):
    # ids_ref:   VMEM (tok_block, 1) int32   (this step's token ids)
    # table_ref: VMEM (V, D)                 (single-buffered, resident)
    # out_ref:   VMEM (tok_block, D)         (this step's output tile)
    tok_block = out_ref.shape[0]
    n_sub = tok_block // sub_block
    table = table_ref[...]
    # Loop-invariant lane iota, hoisted (JAX does not CSE broadcasts).
    tok_iota = jax.lax.broadcasted_iota(jnp.int32, (sub_block, vocab_size), 1)

    def body(c, carry):
        start = pl.multiple_of(c * sub_block, sub_block)
        ids = ids_ref[pl.ds(start, sub_block), :]                      # (sub, 1)
        eq = tok_iota == ids                                           # (sub, V)
        if fold_scale:
            # f32 path: fold sqrt(d_model) into the (exact) one-hot.
            one_hot = jnp.where(eq, jnp.float32(scale), jnp.float32(0.0))
            one_hot = one_hot.astype(table.dtype)
        else:
            one_hot = eq.astype(table.dtype)
        gathered = jnp.dot(one_hot, table,
                           preferred_element_type=jnp.float32,
                           precision=precision)                        # (sub, D)
        if not fold_scale:
            gathered = gathered * scale
        out_ref[pl.ds(start, sub_block), :] = gathered.astype(out_ref.dtype)
        return carry

    jax.lax.fori_loop(0, n_sub, body, 0, unroll=True)


def token_embedding(ids_2d, table, d_model, tok_block=None):
    """ids_2d: (B, S) int; table: (V, D) -> (B, S, D), scaled by sqrt(d_model)."""
    B, S = ids_2d.shape
    V, D = table.shape
    N = B * S

    if tok_block is None:
        tok_block = _pick_tok_block(N)
    n_pad = _round_up(N, tok_block)
    sub_block = min(SUB_BLOCK, tok_block)

    ids = ids_2d.reshape(-1).astype(jnp.int32)
    if n_pad != N:
        ids = jnp.pad(ids, (0, n_pad - N))       # pad ids -> row 0, sliced off below
    ids = ids.reshape(n_pad, 1)

    is_f32 = jnp.dtype(table.dtype) == jnp.dtype(jnp.float32)
    # HIGHEST keeps f32 table rows exact through the MXU; bf16 tables are already
    # exact in a single bf16 pass (one-hot entries are 0/1), so DEFAULT suffices.
    precision = jax.lax.Precision.HIGHEST if is_f32 else jax.lax.Precision.DEFAULT
    scale = float(math.sqrt(d_model))

    kernel = functools.partial(
        _token_embedding_kernel,
        scale=scale, vocab_size=V, sub_block=sub_block,
        fold_scale=is_f32, precision=precision,
    )

    itemsize = jnp.dtype(table.dtype).itemsize
    # Table single-buffered (constant index_map); ids/out double-buffered.
    vmem_bytes = (
        V * D * itemsize
        + 2 * tok_block * 4
        + 2 * tok_block * D * itemsize
        + (4 << 20)
    )
    vmem_limit = int(min(max(vmem_bytes, 16 << 20),
                         _vmem_capacity_bytes() - (8 << 20)))

    cost = pl.CostEstimate(
        flops=2 * n_pad * V * D,
        transcendentals=0,
        bytes_accessed=n_pad * D * itemsize + V * D * itemsize + n_pad * 4,
    )

    out_flat = pl.pallas_call(
        kernel,
        out_shape=jax.ShapeDtypeStruct((n_pad, D), table.dtype),
        grid=(n_pad // tok_block,),
        in_specs=[
            pl.BlockSpec((tok_block, 1), lambda i: (i, 0)),          # ids tile
            pl.BlockSpec((V, D), lambda i: (0, 0),                   # full table,
                         pipeline_mode=pl.Buffered(1)),              # single buffer
        ],
        out_specs=pl.BlockSpec((tok_block, D), lambda i: (i, 0)),
        compiler_params=pltpu.CompilerParams(
            dimension_semantics=("parallel",),                       # disjoint tiles
            vmem_limit_bytes=vmem_limit,
        ),
        cost_estimate=cost,
    )(ids, table)

    return out_flat[:N].reshape(B, S, D)


if __name__ == "__main__":
    # Small, deterministic synthetic setup (matches nn.Embedding(vocab, d_model)).
    vocab_size = 32
    d_model = 128
    B, S = 2, 8

    key = jax.random.PRNGKey(0)
    k_tab, k_ids = jax.random.split(key)
    # nn.Embedding default init: N(0, 1)
    table = jax.random.normal(k_tab, (vocab_size, d_model), dtype=jnp.float32)
    ids = jax.random.randint(k_ids, (B, S), 0, vocab_size, dtype=jnp.int32)

    out = token_embedding(ids, table, d_model)
    out = jax.block_until_ready(out)

    # Pure-JAX reference check.
    ref = jnp.take(table, ids, axis=0) * math.sqrt(d_model)
    assert out.shape == (B, S, d_model)
    assert jnp.allclose(out, ref, atol=1e-5, rtol=1e-5)

    print("KERNEL_OK")
</pallas_src>

<mosaic_0001>
module attributes {stable_mosaic.version = 11 : i64} {
  func.func @_token_embedding_kernel(%arg0: i32, %arg1: memref<8x1xi32, #tpu.memory_space<vmem>>, %arg2: memref<32x128xf32, #tpu.memory_space<vmem>>, %arg3: memref<8x128xf32, #tpu.memory_space<vmem>>) attributes {dimension_semantics = [#tpu.dimension_semantics<parallel>], iteration_bounds = array<i64: 2>, scalar_prefetch = 0 : i64, scratch_operands = 0 : i64, tpu.core_type = #tpu.core_type<tc>, window_params = [{transform_indices = @transform_0, window_bounds = array<i64: 8, 1>}, {pipeline_mode = #tpu.pipeline_mode<synchronous>, transform_indices = @transform_1, window_bounds = array<i64: 32, 128>}, {transform_indices = @transform_2, window_bounds = array<i64: 8, 128>}]} {
    %c0 = arith.constant 0 : index
    %c0_0 = arith.constant 0 : index
    %0 = vector.load %arg2[%c0, %c0_0] : memref<32x128xf32, #tpu.memory_space<vmem>>, vector<32x128xf32>
    %1 = tpu.iota {dimensions = array<i32: 1>} : vector<8x32xi32>
    %c0_i32 = arith.constant 0 : i32
    %c8_i32 = arith.constant 8 : i32
    %2 = arith.muli %c0_i32, %c8_i32 : i32
    %3 = tpu.assume_multiple %2, 8 : i32
    %4 = arith.index_cast %3 : i32 to index
    %c0_1 = arith.constant 0 : index
    %5 = vector.load %arg1[%4, %c0_1] : memref<8x1xi32, #tpu.memory_space<vmem>>, vector<8x1xi32>
    %6 = vector.broadcast %5 : vector<8x1xi32> to vector<8x32xi32>
    %7 = arith.cmpi eq, %1, %6 : vector<8x32xi32>
    %cst = arith.constant 11.3137083 : f32
    %cst_2 = arith.constant 0.000000e+00 : f32
    %8 = vector.broadcast %cst : f32 to vector<8x32xf32>
    %9 = vector.broadcast %cst_2 : f32 to vector<8x32xf32>
    %10 = arith.select %7, %8, %9 : vector<8x32xi1>, vector<8x32xf32>
    %cst_3 = arith.constant dense<0.000000e+00> : vector<8x128xf32>
    %11 = tpu.matmul %10, %0, %cst_3 {dimension_numbers = #tpu.dot_dimension_numbers<[1], [0], [0], [1], [0, 0, 1, 1], [], []>, precision = #tpu.contract_precision<fp32>} : vector<8x32xf32>, vector<32x128xf32>, vector<8x128xf32> -> vector<8x128xf32>
    %12 = arith.index_cast %3 : i32 to index
    %c0_4 = arith.constant 0 : index
    %13 = vector.load %arg3[%12, %c0_4] : memref<8x128xf32, #tpu.memory_space<vmem>>, vector<8x128xf32>
    tpu.vector_store %arg3[%12, %c0_4], %11 {strides = array<i32>} : memref<8x128xf32, #tpu.memory_space<vmem>>, vector<8x128xf32>,
    %c1_i32 = arith.constant 1 : i32
    return
  }
  func.func @transform_0(%arg0: i32) -> (i32, i32) {
    %c0_i32 = arith.constant 0 : i32
    %c0_i32_0 = arith.constant 0 : i32
    return %arg0, %c0_i32 : i32, i32
  }
  func.func @transform_1(%arg0: i32) -> (i32, i32) {
    %c0_i32 = arith.constant 0 : i32
    %c0_i32_0 = arith.constant 0 : i32
    %c0_i32_1 = arith.constant 0 : i32
    return %c0_i32, %c0_i32_0 : i32, i32
  }
  func.func @transform_2(%arg0: i32) -> (i32, i32) {
    %c0_i32 = arith.constant 0 : i32
    %c0_i32_0 = arith.constant 0 : i32
    return %arg0, %c0_i32 : i32, i32
  }
}

</mosaic_0001>

<llo_original>
// kernel: tpu_custom_call.1
$region0: #{tpu_custom_call.1}
  #allocation0 [shape = 'u32[]', space=smem, size = 0x4, offset = 0x4, fixed_abs, tag = 'smem constant byte address 0x4 - core index']
  #allocation1 [shape = 'u32[72,128]{1,0:T(1,128)}', space=vmem, size = 0x9000, scoped, tag = 'internal scratch']
  %s0 = inlined_call_operand.vmem [shape: s32[16,1], index: 0, kind: input, shape index: {}]
  %s1 = inlined_call_operand.hbm [shape: f32[32,128], index: 1, kind: input, shape index: {}]
  %s2 = inlined_call_operand.hbm [shape: f32[16,128], index: 2, kind: output, shape index: {}]
  %s3 = sld [smem:[#allocation0]]
  $region45: #{tpu_custom_call.1} parent=0
    _
  %s5 = ssub.s32 1, %s3
  %s6 = scalar_select 0, %s5, %s3
  $region1: #{tpu_custom_call.1} parent=0
    #allocation2 [shape = 'u8[16384]{0}', space=vmem, size = 0x4000, scoped, tag = 'input window, operand 1, single buffered']
    #allocation3 [shape = 's32[2]{0}', space=sflag, size = 0x8, scoped, tag = 'scoped memory for tpu_custom_call.1']
    #allocation4 [shape = 's32[2]{0}', space=sflag, size = 0x8, scoped, tag = 'scoped memory for tpu_custom_call.1']
    #allocation5 [shape = 'u8[8192]{0}', space=vmem, size = 0x2000, scoped, tag = 'output window, operand 0']
    %7 = vsyncpa [#allocation3], 0
    %8 = vsyncpa [#allocation4], 0
    %s9 = scalar_lea.sflag [#allocation4], 1
    %10 = vsyncpa %s9, 0
    loop: start=0, step=1, limit=4
    $region2: #{tpu_custom_call.1} parent=1 // loop_pre_header
      _
    $region3: #{tpu_custom_call.1} parent=1 // loop_header
      %s12 = sphi 0, %s16
      %p13 = scmp.ge.s32.totalorder %s12, 4
      %s22 = sphi 0, %s24
      %s25 = sphi 0, %s22
      %s26 = sphi 0, %s25
      %s42 = sphi 0, %s26
      %s46 = sphi 0, %s46
      %s48 = sphi 0, %s46
      %s49 = sphi 0, %s48
      %s63 = sphi 0, %s49
      %s69 = sphi 0, %s71
      %s72 = sphi 0, %s69
      %s73 = sphi 0, %s72
      %s89 = sphi 0, %s73
    $region4: #{tpu_custom_call.1} parent=1 // loop_header_branch
      %15 = sbr.rel (%p13) target = $region8
    $region5: #{tpu_custom_call.1} parent=1 // loop_body
      %s17 = ssub.s32 %s12, 1
      %s18 = ssub.s32 %s12, 2
      %s19 = sadd.s32 %s12, 1
      %s20 = ssub.s32 %s12, %s19
      %p21 = scmp.eq.s32.totalorder %s20, 0
      %s23 = sadd.s32 %s22, 1
      %s24 = scalar_select %p21, %s22, %s23
      %p27 = pneg %p21
      %p28 = scmp.eq.s32.totalorder %s12, 1
      %p29 = por %p27, %p28
      %p30 = scmp.ne.s32.totalorder %s22, %s25
      %p31 = scmp.eq.s32.totalorder %s12, 0
      %p32 = por %p30, %p31
      %p33 = scmp.ne.s32.totalorder %s22, %s25
      %p34 = scmp.eq.s32.totalorder %s17, 1
      %p35 = por %p33, %p34
      %p36 = scmp.ne.s32.totalorder %s25, %s26
      %p37 = scmp.eq.s32.totalorder %s17, 0
      %p38 = por %p36, %p37
      %p39 = scmp.ne.s32.totalorder %s25, %s26
      %p40 = scmp.eq.s32.totalorder %s18, 1
      %p41 = por %p39, %p40
      %p43 = scmp.ne.s32.totalorder %s26, %s42
      %p44 = scmp.eq.s32.totalorder %s18, 0
      %p45 = por %p43, %p44
      %s47 = sadd.s32 %s46, 1
      %p50 = scmp.eq.s32.totalorder %s12, 1
      %p51 = scmp.ne.s32.totalorder %s46, %s48
      %p52 = scmp.eq.s32.totalorder %s12, 0
      %p53 = por %p51, %p52
      %p54 = scmp.ne.s32.totalorder %s46, %s48
      %p55 = scmp.eq.s32.totalorder %s17, 1
      %p56 = por %p54, %p55
      %p57 = scmp.ne.s32.totalorder %s48, %s49
      %p58 = scmp.eq.s32.totalorder %s17, 0
      %p59 = por %p57, %p58
      %p60 = scmp.ne.s32.totalorder %s48, %s49
      %p61 = scmp.eq.s32.totalorder %s18, 1
      %p62 = por %p60, %p61
      %p64 = scmp.ne.s32.totalorder %s49, %s63
      %p65 = scmp.eq.s32.totalorder %s18, 0
      %p66 = por %p64, %p65
      %s67 = ssub.s32 %s12, %s19
      %p68 = scmp.eq.s32.totalorder %s67, 0
      %s70 = sadd.s32 %s69, 1
      %s71 = scalar_select %p68, %s69, %s70
      %p74 = pneg %p68
      %p75 = scmp.eq.s32.totalorder %s12, 1
      %p76 = por %p74, %p75
      %p77 = scmp.ne.s32.totalorder %s69, %s72
      %p78 = scmp.eq.s32.totalorder %s12, 0
      %p79 = por %p77, %p78
      %p80 = scmp.ne.s32.totalorder %s69, %s72
      %p81 = scmp.eq.s32.totalorder %s17, 1
      %p82 = por %p80, %p81
      %p83 = scmp.ne.s32.totalorder %s72, %s73
      %p84 = scmp.eq.s32.totalorder %s17, 0
      %p85 = por %p83, %p84
      %p86 = scmp.ne.s32.totalorder %s72, %s73
      %p87 = scmp.eq.s32.totalorder %s18, 1
      %p88 = por %p86, %p87
      %p90 = scmp.ne.s32.totalorder %s73, %s89
      %p91 = scmp.eq.s32.totalorder %s18, 0
      %p92 = por %p90, %p91
      %p93 = scmp.le.s32.totalorder 1, %s12
      %p94 = scmp.lt.s32.totalorder %s12, 3
      %p95 = pnand %p93, %p94
      %p96 = pneg %p95
      // Predicated region
      $region9: #{tpu_custom_call.1} parent=5 // pred_check
        _
      $region10: #{tpu_custom_call.1} parent=5 // pred_check_branch
        %98 = sbr.rel (%p95) target = $region12
      $region11: #{tpu_custom_call.1} parent=5 // pred_region
        %s99 = ssub.s32 %s12, 1
        // Predicated region
        $region13: #{tpu_custom_call.1} parent=11 // pred_check
          %p100 = pneg %p59
        $region14: #{tpu_custom_call.1} parent=11 // pred_check_branch
          %102 = sbr.rel (%p100) target = $region16
        $region15: #{tpu_custom_call.1} parent=11 // pred_region
          %104 = vsyncadd [#allocation3], 0
          %s105 = sshll.u32 %s1, 4
          %s106 = int_to_ptr.hbm [resolvable:$true] %s105
          %s107 = sshll.u32 [#allocation2], 4
          %s108 = int_to_ptr.vmem [resolvable:$true] %s107
          %113 = dma.hbm_to_vmem [thread:$0]  %s106, 512, %s108, [#allocation3], 128, 128, 8
        $region16: #{tpu_custom_call.1} parent=11 // pred_fallthru
          _
      $region12: #{tpu_custom_call.1} parent=5 // pred_fallthru
        _
      %p114 = scmp.lt.s32.totalorder %s12, 2
      // Predicated region
      $region17: #{tpu_custom_call.1} parent=5 // pred_check
        %p115 = pneg %p114
      $region18: #{tpu_custom_call.1} parent=5 // pred_check_branch
        %117 = sbr.rel (%p115) target = $region20
      $region19: #{tpu_custom_call.1} parent=5 // pred_region
        // Predicated region
        $region21: #{tpu_custom_call.1} parent=19 // pred_check
          %p118 = pneg %p32
        $region22: #{tpu_custom_call.1} parent=19 // pred_check_branch
          %120 = sbr.rel (%p118) target = $region24
        $region23: #{tpu_custom_call.1} parent=19 // pred_region
          %p121 = scmp.lt.s32.totalorder %s12, 1
          %s122 = scalar_select %p121, %s12, 1
          %s123 = smul.addr %s122, 8
          %s124 = scalar_lea.vmem %s0, %s123
        $region24: #{tpu_custom_call.1} parent=19 // pred_fallthru
          _
      $region20: #{tpu_custom_call.1} parent=5 // pred_fallthru
        _
      %p125 = scmp.le.s32.totalorder 1, %s12
      %p126 = scmp.lt.s32.totalorder %s12, 3
      %p127 = pnand %p125, %p126
      %p128 = pneg %p127
      // Predicated region
      $region25: #{tpu_custom_call.1} parent=5 // pred_check
        _
      $region26: #{tpu_custom_call.1} parent=5 // pred_check_branch
        %130 = sbr.rel (%p127) target = $region28
      $region27: #{tpu_custom_call.1} parent=5 // pred_region
        %s131 = ssub.s32 %s12, 1
        // Predicated region
        $region29: #{tpu_custom_call.1} parent=27 // pred_check
          %p132 = pneg %p59
        $region30: #{tpu_custom_call.1} parent=27 // pred_check_branch
          %134 = sbr.rel (%p132) target = $region32
        $region31: #{tpu_custom_call.1} parent=27 // pred_region
          %136 = dma.done [#allocation3], 512
        $region32: #{tpu_custom_call.1} parent=27 // pred_fallthru
          _
        %p137 = scmp.lt.s32.totalorder %s17, 1
        %s138 = scalar_select %p137, %s17, 1
        %s139 = smul.addr %s138, 8
        %s140 = scalar_lea.vmem %s0, %s139
        %p141 = pneg %p38
        %p142 = pneg %p35
        %p143 = pneg %p59
        %p144 = pneg %p56
        %p145 = pneg %p85
        %p146 = pneg %p82
        %s147 = sand.u32 %s72, 1
        %s148 = scalar_lea.sflag [#allocation4], %s147
        %s149 = sand.u32 %s72, 1
        %s150 = smul.addr %s149, 8
        %s151 = scalar_lea.vmem [#allocation5], %s150
        %p152 = scmp.lt.s32.totalorder %s17, 1
        %s153 = scalar_select %p152, %s17, 1
        %s154 = smul.addr %s153, 8
        %s155 = scalar_lea.vmem %s0, %s154
        %v156 = vld [vmem:[#allocation2] sm:$0xff]
        %v157 = vld [vmem:[#allocation2 + $0x8] sm:$0xff]
        %v158 = vld [vmem:[#allocation2 + $0x10] sm:$0xff]
        %v159 = vld [vmem:[#allocation2 + $0x18] sm:$0xff]
        %v160 = vlaneseq
        %v161 = vand.u32 %v160, 127
        %v162 = vld [vmem:[%s155] sm:$0xff]
        %163 = vset.pattern.permute.xlu0 0
        %164 = vperm.xlu0 %163, %v162
        %v165 = vpop.permute.xlu0 %164
        %vm166 = vcmp.eq.s32.totalorder %v161, %v165
        %v167 = vsel %vm166, 11.313708, 0.0
        %vm168 = vcmask 261120
        %v170 = vsel %vm168, %v167, 0
        %172 = vmatpush.msra.mxu0 0.0
        %173 = vmatpush.msra.mxu0 0.0
        %174 = vmatpush.msra.mxu0 0.0
        %175 = vmatpush.msra.mxu0 0.0
        %176 = vmatpush.msra.mxu0 0.0
        %177 = vmatpush.msra.mxu0 0.0
        %178 = vmatpush.msra.mxu0 0.0
        %179 = vmatpush.msra.mxu0 0.0
        %180 = vmatpush.msra.mxu0 0.0
        %181 = vmatpush.msra.mxu0 0.0
        %182 = vmatpush.msra.mxu0 0.0
        %183 = vmatpush.msra.mxu0 0.0
        %v184 = vand.u32 %v159, 4294901760
        %185 = vmatpush.msra.mxu0 %v184
        %v186 = vand.u32 %v158, 4294901760
        %187 = vmatpush.msra.mxu0 %v186
        %v188 = vand.u32 %v157, 4294901760
        %189 = vmatpush.msra.mxu0 %v188
        %v190 = vand.u32 %v156, 4294901760
        %191 = vmatpush.msra.mxu0 %v190
        %v192 = vand.u32 %v170, 4294901760
        %v193 = vsub.f32 %v170, %v192
        %v194 = vand.u32 %v193, 4294901760
        %v195 = vsub.f32 %v193, %v194
        %v196 = vand.u32 %v195, 4294901760
        %197 = vmatmul.f32.gmra.mxu0 %v196
        %v198 = vpop.f32.mrf.mxu0
        %v199 = vadd.f32 0.0, %v198
        %200 = vdwg.mxu0
        %201 = vmatpush.msra.mxu0 0.0
        %202 = vmatpush.msra.mxu0 0.0
        %203 = vmatpush.msra.mxu0 0.0
        %204 = vmatpush.msra.mxu0 0.0
        %205 = vmatpush.msra.mxu0 0.0
        %206 = vmatpush.msra.mxu0 0.0
        %207 = vmatpush.msra.mxu0 0.0
        %208 = vmatpush.msra.mxu0 0.0
        %209 = vmatpush.msra.mxu0 0.0
        %210 = vmatpush.msra.mxu0 0.0
        %211 = vmatpush.msra.mxu0 0.0
        %212 = vmatpush.msra.mxu0 0.0
        %v213 = vand.u32 %v159, 4294901760
        %v214 = vsub.f32 %v159, %v213
        %v215 = vand.u32 %v214, 4294901760
        %v216 = vsub.f32 %v214, %v215
        %v217 = vand.u32 %v216, 4294901760
        %218 = vmatpush.msra.mxu0 %v217
        %v219 = vand.u32 %v158, 4294901760
        %v220 = vsub.f32 %v158, %v219
        %v221 = vand.u32 %v220, 4294901760
        %v222 = vsub.f32 %v220, %v221
        %v223 = vand.u32 %v222, 4294901760
        %224 = vmatpush.msra.mxu0 %v223
        %v225 = vand.u32 %v157, 4294901760
        %v226 = vsub.f32 %v157, %v225
        %v227 = vand.u32 %v226, 4294901760
        %v228 = vsub.f32 %v226, %v227
        %v229 = vand.u32 %v228, 4294901760
        %230 = vmatpush.msra.mxu0 %v229
        %v231 = vand.u32 %v156, 4294901760
        %v232 = vsub.f32 %v156, %v231
        %v233 = vand.u32 %v232, 4294901760
        %v234 = vsub.f32 %v232, %v233
        %v235 = vand.u32 %v234, 4294901760
        %236 = vmatpush.msra.mxu0 %v235
        %v237 = vand.u32 %v170, 4294901760
        %238 = vmatmul.f32.gmra.mxu0 %v237
        %v239 = vpop.f32.mrf.mxu0
        %v240 = vadd.f32 %v199, %v239
        %241 = vdwg.mxu0
        %242 = vmatpush.msra.mxu0 0.0
        %243 = vmatpush.msra.mxu0 0.0
        %244 = vmatpush.msra.mxu0 0.0
        %245 = vmatpush.msra.mxu0 0.0
        %246 = vmatpush.msra.mxu0 0.0
        %247 = vmatpush.msra.mxu0 0.0
        %248 = vmatpush.msra.mxu0 0.0
        %249 = vmatpush.msra.mxu0 0.0
        %250 = vmatpush.msra.mxu0 0.0
        %251 = vmatpush.msra.mxu0 0.0
        %252 = vmatpush.msra.mxu0 0.0
        %253 = vmatpush.msra.mxu0 0.0
        %v254 = vand.u32 %v159, 4294901760
        %v255 = vsub.f32 %v159, %v254
        %256 = vmatpush.msra.mxu0 %v255
        %v257 = vand.u32 %v158, 4294901760
        %v258 = vsub.f32 %v158, %v257
        %259 = vmatpush.msra.mxu0 %v258
        %v260 = vand.u32 %v157, 4294901760
        %v261 = vsub.f32 %v157, %v260
        %262 = vmatpush.msra.mxu0 %v261
        %v263 = vand.u32 %v156, 4294901760
        %v264 = vsub.f32 %v156, %v263
        %265 = vmatpush.msra.mxu0 %v264
        %v266 = vand.u32 %v170, 4294901760
        %v267 = vsub.f32 %v170, %v266
        %268 = vmatmul.f32.gmra.mxu0 %v267
        %v269 = vpop.f32.mrf.mxu0
        %v270 = vadd.f32 %v240, %v269
        %271 = vdwg.mxu0
        %272 = vmatpush.msra.mxu0 0.0
        %273 = vmatpush.msra.mxu0 0.0
        %274 = vmatpush.msra.mxu0 0.0
        %275 = vmatpush.msra.mxu0 0.0
        %276 = vmatpush.msra.mxu0 0.0
        %277 = vmatpush.msra.mxu0 0.0
        %278 = vmatpush.msra.mxu0 0.0
        %279 = vmatpush.msra.mxu0 0.0
        %280 = vmatpush.msra.mxu0 0.0
        %281 = vmatpush.msra.mxu0 0.0
        %282 = vmatpush.msra.mxu0 0.0
        %283 = vmatpush.msra.mxu0 0.0
        %v284 = vand.u32 %v159, 4294901760
        %285 = vmatpush.msra.mxu0 %v284
        %v286 = vand.u32 %v158, 4294901760
        %287 = vmatpush.msra.mxu0 %v286
        %v288 = vand.u32 %v157, 4294901760
        %289 = vmatpush.msra.mxu0 %v288
        %v290 = vand.u32 %v156, 4294901760
        %291 = vmatpush.msra.mxu0 %v290
        %v292 = vand.u32 %v170, 4294901760
        %v293 = vsub.f32 %v170, %v292
        %v294 = vand.u32 %v293, 4294901760
        %295 = vmatmul.f32.gmra.mxu0 %v294
        %v296 = vpop.f32.mrf.mxu0
        %v297 = vadd.f32 %v270, %v296
        %298 = vdwg.mxu0
        %299 = vmatpush.msra.mxu0 0.0
        %300 = vmatpush.msra.mxu0 0.0
        %301 = vmatpush.msra.mxu0 0.0
        %302 = vmatpush.msra.mxu0 0.0
        %303 = vmatpush.msra.mxu0 0.0
        %304 = vmatpush.msra.mxu0 0.0
        %305 = vmatpush.msra.mxu0 0.0
        %306 = vmatpush.msra.mxu0 0.0
        %307 = vmatpush.msra.mxu0 0.0
        %308 = vmatpush.msra.mxu0 0.0
        %309 = vmatpush.msra.mxu0 0.0
        %310 = vmatpush.msra.mxu0 0.0
        %v311 = vand.u32 %v159, 4294901760
        %v312 = vsub.f32 %v159, %v311
        %v313 = vand.u32 %v312, 4294901760
        %314 = vmatpush.msra.mxu0 %v313
        %v315 = vand.u32 %v158, 4294901760
        %v316 = vsub.f32 %v158, %v315
        %v317 = vand.u32 %v316, 4294901760
        %318 = vmatpush.msra.mxu0 %v317
        %v319 = vand.u32 %v157, 4294901760
        %v320 = vsub.f32 %v157, %v319
        %v321 = vand.u32 %v320, 4294901760
        %322 = vmatpush.msra.mxu0 %v321
        %v323 = vand.u32 %v156, 4294901760
        %v324 = vsub.f32 %v156, %v323
        %v325 = vand.u32 %v324, 4294901760
        %326 = vmatpush.msra.mxu0 %v325
        %v327 = vand.u32 %v170, 4294901760
        %328 = vmatmul.f32.gmra.mxu0 %v327
        %v329 = vpop.f32.mrf.mxu0
        %v330 = vadd.f32 %v297, %v329
        %331 = vdwg.mxu0
        %332 = vmatpush.msra.mxu0 0.0
        %333 = vmatpush.msra.mxu0 0.0
        %334 = vmatpush.msra.mxu0 0.0
        %335 = vmatpush.msra.mxu0 0.0
        %336 = vmatpush.msra.mxu0 0.0
        %337 = vmatpush.msra.mxu0 0.0
        %338 = vmatpush.msra.mxu0 0.0
        %339 = vmatpush.msra.mxu0 0.0
        %340 = vmatpush.msra.mxu0 0.0
        %341 = vmatpush.msra.mxu0 0.0
        %342 = vmatpush.msra.mxu0 0.0
        %343 = vmatpush.msra.mxu0 0.0
        %v344 = vand.u32 %v159, 4294901760
        %345 = vmatpush.msra.mxu0 %v344
        %v346 = vand.u32 %v158, 4294901760
        %347 = vmatpush.msra.mxu0 %v346
        %v348 = vand.u32 %v157, 4294901760
        %349 = vmatpush.msra.mxu0 %v348
        %v350 = vand.u32 %v156, 4294901760
        %351 = vmatpush.msra.mxu0 %v350
        %v352 = vand.u32 %v170, 4294901760
        %353 = vmatmul.f32.gmra.mxu0 %v352
        %v354 = vpop.f32.mrf.mxu0
        %v355 = vadd.f32 %v330, %v354
        %356 = vdwg.mxu0
        %357 = vst [vmem:[%s151] sm:$0xff] %v355
        %s358 = sand.u32 %s72, 1
        %s359 = scalar_lea.sflag [#allocation4], %s358
        %s360 = sand.u32 %s72, 1
        %s361 = smul.addr %s360, 8
        %s362 = scalar_lea.vmem [#allocation5], %s361
        // Predicated region
        $region33: #{tpu_custom_call.1} parent=27 // pred_check
          %p363 = pneg %p82
        $region34: #{tpu_custom_call.1} parent=27 // pred_check_branch
          %365 = sbr.rel (%p363) target = $region36
        $region35: #{tpu_custom_call.1} parent=27 // pred_region
          %367 = vsyncadd %s359, 0
          %s368 = smul.addr %s17, 8
          %s369 = scalar_lea.hbm %s2, %s368
          %s371 = sshll.u32 %s362, 4
          %s372 = int_to_ptr.vmem [resolvable:$true] %s371
          %s373 = sshll.u32 %s369, 4
          %s374 = int_to_ptr.hbm [resolvable:$true] %s373
          %376 = dma.vmem_to_hbm [thread:$0]  %s372, 128, %s374, %s359
        $region36: #{tpu_custom_call.1} parent=27 // pred_fallthru
          _
      $region28: #{tpu_custom_call.1} parent=5 // pred_fallthru
        _
      %p377 = scmp.le.s32.totalorder 2, %s12
      // Predicated region
      $region37: #{tpu_custom_call.1} parent=5 // pred_check
        %p378 = pneg %p377
      $region38: #{tpu_custom_call.1} parent=5 // pred_check_branch
        %380 = sbr.rel (%p378) target = $region40
      $region39: #{tpu_custom_call.1} parent=5 // pred_region
        %s381 = ssub.s32 %s12, 2
        // Predicated region
        $region41: #{tpu_custom_call.1} parent=39 // pred_check
          %p382 = pneg %p88
        $region42: #{tpu_custom_call.1} parent=39 // pred_check_branch
          %384 = sbr.rel (%p382) target = $region44
        $region43: #{tpu_custom_call.1} parent=39 // pred_region
          %s385 = sand.u32 %s73, 1
          %s386 = scalar_lea.sflag [#allocation4], %s385
          %s387 = sand.u32 %s73, 1
          %s388 = smul.addr %s387, 8
          %s389 = scalar_lea.vmem [#allocation5], %s388
          %391 = dma.done %s386, 128
        $region44: #{tpu_custom_call.1} parent=39 // pred_fallthru
          _
      $region40: #{tpu_custom_call.1} parent=5 // pred_fallthru
        _
    $region6: #{tpu_custom_call.1} parent=1 // loop_footer
      %s16 = sadd.s32 1, %s12
    $region7: #{tpu_custom_call.1} parent=1 // loop_footer_branch
      %11 = sbr.rel target = $region3
    $region8: #{tpu_custom_call.1} parent=1 // loop_exit
      _
    %392 = vsyncpa [#allocation3], 1
    %s393 = scalar_lea.sflag [#allocation3], 1
    %394 = vsyncpa %s393, 1
    %395 = vsyncpa [#allocation4], 1
    %s396 = scalar_lea.sflag [#allocation4], 1
    %397 = vsyncpa %s396, 1

</llo_original>
